<compile_context>
chip_gen: v7x
topology: tpu7x:2x2x1
jax: 0.10.0
libtpu: 0.0.40
codegen_flags: <defaults>
</compile_context>

<pallas_src>
import jax
import jax.numpy as jnp
from jax.experimental import pallas as pl
from jax.experimental.pallas import tpu as pltpu

ALPHA_LRELU = 0.05     # GATLayer LeakyReLU slope
NEG_BIG = -1e30        # finite "-inf": exp(NEG_BIG - finite) == 0 exactly
ROWMAX_FLOOR = -1e20   # row-max clamp so fully-masked rows give p == 0
LANE = 128


def _round_up(x, m):
    return (x + m - 1) // m * m


def _pad2(a, rows, cols):
    return jnp.pad(a, ((0, rows - a.shape[0]), (0, cols - a.shape[1])))


# ---------------------------------------------------------------------------
# Hardware-aware defaults
# ---------------------------------------------------------------------------
def _vmem_capacity_bytes():
    try:
        return int(pltpu.get_tpu_info().vmem_capacity_bytes)
    except Exception:
        return 64 << 20            # conservative (v7x-sized) fallback


def _default_row_tile():
    # v5e's MXU is 4x(128x128) -> TM=128; v6e / v7x have 256-wide MXUs -> 256.
    try:
        kind = jax.devices()[0].device_kind.lower()
    except Exception:
        return 256
    if "v5e" in kind or "v5 lite" in kind or "v5lite" in kind:
        return 128
    return 256


def _compiler_params(working_set_bytes, semantics):
    cap = _vmem_capacity_bytes()
    hi = min(cap - (8 << 20), 112 << 20)   # ~56 MiB on v7x, ~112 MiB on v5e/v6e
    v = int(min(max(working_set_bytes + (8 << 20), 32 << 20), hi))
    return pltpu.CompilerParams(dimension_semantics=semantics,
                                vmem_limit_bytes=v)


# ---------------------------------------------------------------------------
# Kernels
# ---------------------------------------------------------------------------
def gat_project_kernel(x_ref, wt_ref, a_ref, h0_ref, s_ref):
    """h0 = x @ W^T (bf16 MXU, f32 acc); per-node scores h0 @ [a_src|a_dst|0..]."""
    h0 = jnp.dot(x_ref[...], wt_ref[...], preferred_element_type=jnp.float32)
    h0_ref[...] = h0.astype(jnp.bfloat16)          # bf16 activation for att @ h0
    # (TM, 128) lane-dense score block; only lanes 0 (src) and 1 (dst) are used.
    s_ref[...] = jnp.dot(h0, a_ref[...], preferred_element_type=jnp.float32)


def _make_attend_kernel(tn, weighted, fuse_fc):
    """Online-softmax GAT aggregation over (TM, TN) adjacency tiles.

    Column-block grid axis (axis 1) is the reduction axis; (m, l, acc) live in
    VMEM scratch.  weighted=False streams an int8 0/1 mask and skips the adj*p
    multiply; weighted=True streams exact f32 edge weights.  fuse_fc=True also
    applies the final Linear + log_softmax while the rows are still in VMEM.
    """

    def kernel(adj_ref, h0_ref, ssrc_ref, sdst_ref, *rest):
        if fuse_fc:
            wfc_ref, bfc_ref, out_ref, m_sc, l_sc, acc_sc = rest
        else:
            out_ref, m_sc, l_sc, acc_sc = rest
        j = pl.program_id(1)

        @pl.when(j == 0)
        def _():
            m_sc[...] = jnp.full_like(m_sc, NEG_BIG)
            l_sc[...] = jnp.zeros_like(l_sc)
            acc_sc[...] = jnp.zeros_like(acc_sc)

        a = adj_ref[...]
        if weighted:
            w = a                                    # exact f32 edge weights
            edge = w != 0.0
        else:
            # int8 mask -> f32 compare (keeps everything in f32 layout; the
            # HBM stream stays 1 byte / entry).
            edge = a.astype(jnp.float32) != 0.0

        # score[i, j] = <h0_i, a_src> + b + <h0_j, a_dst>   (b folded into ssrc)
        s = ssrc_ref[...] + sdst_ref[...]
        s = jnp.where(s > 0, s, ALPHA_LRELU * s)     # LeakyReLU
        s = jnp.where(edge, s, NEG_BIG)              # mask non-edges

        m_prev = m_sc[...]
        m_new = jnp.maximum(m_prev, jnp.max(s, axis=1, keepdims=True))
        # Floor keeps fully-masked rows at a finite max so their p underflows to 0.
        m_new = jnp.maximum(m_new, ROWMAX_FLOOR)
        corr = jnp.exp(m_prev - m_new)
        p = jnp.exp(s - m_new)                       # non-edges -> exactly 0

        # Slice the resident projection for this column block (fetched from HBM once).
        col0 = pl.multiple_of(j * tn, tn)
        h0_blk = h0_ref[pl.ds(col0, tn), :]

        l_sc[...] = corr * l_sc[...] + jnp.sum(p, axis=1, keepdims=True)
        if weighted:
            p = w * p                                # adj * adj_att (weighted graphs)
        acc_sc[...] = corr * acc_sc[...] + jnp.dot(
            p.astype(jnp.bfloat16), h0_blk, preferred_element_type=jnp.float32)
        m_sc[...] = m_new

        @pl.when(j == pl.num_programs(1) - 1)
        def _():
            denom = jnp.where(l_sc[...] == 0.0, 1.0, l_sc[...])   # isolated rows -> 0
            inv = pl.reciprocal(denom, approx=True)               # EUP; ~1e-3 rel. err
            h = jnp.maximum(acc_sc[...] * inv, 0.0)               # scale AFTER matmul + ReLU
            # TODO(synk): dropout implemented as identity (eval-mode; no RNG mask).
            if fuse_fc:
                logits = jnp.dot(h.astype(jnp.bfloat16), wfc_ref[...],
                                 preferred_element_type=jnp.float32) + bfc_ref[...]
                mx = jnp.max(logits, axis=1, keepdims=True)
                lse = mx + jnp.log(jnp.sum(jnp.exp(logits - mx), axis=1, keepdims=True))
                out_ref[...] = logits - lse
            else:
                out_ref[...] = h.astype(out_ref.dtype)            # bf16 activation out

    return kernel


# ---------------------------------------------------------------------------
# Layer wrapper
# ---------------------------------------------------------------------------
def _gat_layer(h_in, adj_tiles, wt, a_cols, bias, tm, tn, *, weighted,
               fc_wt=None, fc_b=None):
    """One GAT layer (projection + online-softmax attention / aggregation)."""
    np_, fin = h_in.shape
    hp = wt.shape[1]
    grid_rows, grid_cols = np_ // tm, np_ // tn

    # -- phase A: projection + per-node scores (lane-dense output) ----------
    est_a = (4 * tm * fin * 2 + fin * hp * 2 + hp * LANE * 4
             + 4 * tm * hp * 2 + 4 * tm * LANE * 4)
    h0, scores = pl.pallas_call(
        gat_project_kernel,
        out_shape=(jax.ShapeDtypeStruct((np_, hp), jnp.bfloat16),
                   jax.ShapeDtypeStruct((np_, LANE), jnp.float32)),
        grid=(grid_rows,),
        in_specs=[pl.BlockSpec((tm, fin), lambda i: (i, 0)),
                  pl.BlockSpec((fin, hp), lambda i: (0, 0)),
                  pl.BlockSpec((hp, LANE), lambda i: (0, 0))],
        out_specs=(pl.BlockSpec((tm, hp), lambda i: (i, 0)),
                   pl.BlockSpec((tm, LANE), lambda i: (i, 0))),
        compiler_params=_compiler_params(est_a, ("parallel",)),
    )(h_in, wt, a_cols)

    # Fold the attention bias into the per-source score: s_ij = ssrc_i + sdst_j.
    ssrc = scores[:, 0:1] + bias                     # (Np, 1) f32
    sdst = jnp.reshape(scores[:, 1:2], (1, np_))     # (1, Np) f32

    # -- phase B: online masked softmax + aggregation (+ optional fused FC) --
    fuse_fc = fc_wt is not None
    in_specs = [pl.BlockSpec((tm, tn), lambda i, j: (i, j)),     # adjacency tile
                pl.BlockSpec((np_, hp), lambda i, j: (0, 0)),    # resident h0
                pl.BlockSpec((tm, 1), lambda i, j: (i, 0)),      # ssrc
                pl.BlockSpec((1, tn), lambda i, j: (0, j))]      # sdst
    inputs = [adj_tiles, h0, ssrc, sdst]
    if fuse_fc:
        cp = fc_wt.shape[1]
        in_specs += [pl.BlockSpec((hp, cp), lambda i, j: (0, 0)),
                     pl.BlockSpec((1, cp), lambda i, j: (0, 0))]
        inputs += [fc_wt, fc_b]
        out_shape = jax.ShapeDtypeStruct((np_, cp), jnp.float32)
        out_spec = pl.BlockSpec((tm, cp), lambda i, j: (i, 0))
    else:
        cp = 0
        out_shape = jax.ShapeDtypeStruct((np_, hp), jnp.bfloat16)
        out_spec = pl.BlockSpec((tm, hp), lambda i, j: (i, 0))

    adj_bytes = 4 if weighted else 1
    est_b = (2 * tm * tn * adj_bytes      # double-buffered adjacency tiles
             + np_ * hp * 2               # resident h0 (bf16)
             + 6 * tm * tn * 4            # f32 score / p temporaries (+ slack)
             + 4 * tm * hp * 4            # acc scratch + output blocks
             + hp * cp * 2)               # fused FC weights (if any)
    return pl.pallas_call(
        _make_attend_kernel(tn, weighted, fuse_fc),
        out_shape=out_shape,
        grid=(grid_rows, grid_cols),
        in_specs=in_specs,
        out_specs=out_spec,
        scratch_shapes=[pltpu.VMEM((tm, 1), jnp.float32),    # running row max m
                        pltpu.VMEM((tm, 1), jnp.float32),    # running denom l
                        pltpu.VMEM((tm, hp), jnp.float32)],  # running aggregation
        compiler_params=_compiler_params(est_b, ("parallel", "arbitrary")),
    )(*inputs)


def gnn_forward(x, adj, params, *, block_rows=None, block_cols=512, unweighted=None):
    """Forward pass of the GNN (2x GAT + FC + log_softmax) via Pallas TPU kernels."""
    n, nfeat = x.shape
    nhid = params["w1"].shape[0]
    nclass = params["wfc"].shape[0]

    fp = _round_up(nfeat, LANE)
    hp = _round_up(nhid, LANE)
    cp = _round_up(nclass, LANE)

    # Tile sizes: TM is generation-aware (128 on v5e, 256 on v6e/v7x), TN ~512
    # by default; both are clamped to the padded node count and Np is a
    # multiple of both so the 2-D attention grid divides evenly.
    n128 = _round_up(n, LANE)
    tm = min(block_rows if block_rows is not None else _default_row_tile(), n128)
    tn = min(max(block_cols, tm), _round_up(n, tm))
    tn = _round_up(tn, tm)
    np_ = _round_up(n, tn)

    # 0/1 adjacency -> 1-byte edge mask (exact, 4x less N^2 HBM traffic than
    # f32); weighted graphs keep exact f32 edge weights.
    if unweighted is None:
        try:
            unweighted = bool(jnp.all((adj == 0.0) | (adj == 1.0)))
        except Exception:          # abstract tracer (e.g. under jit): be safe
            unweighted = False
    adj_p = _pad2(adj, np_, np_)
    adj_p = adj_p.astype(jnp.int8) if unweighted else adj_p.astype(jnp.float32)

    # Wrapper-level layout plumbing: pad / transpose / cast (bf16 activations).
    x_p = _pad2(x, np_, fp).astype(jnp.bfloat16)

    def prep_gat(w, a, fin_p):
        nh = w.shape[0]
        wt = _pad2(w.T, fin_p, hp).astype(jnp.bfloat16)                  # (fin_p, Hp)
        a_cols = jnp.concatenate([a[:, :nh].T, a[:, nh:].T], axis=1)     # (nh, 2)
        return wt, _pad2(a_cols, hp, LANE).astype(jnp.float32)           # (Hp, 128)

    w1t, a1c = prep_gat(params["w1"], params["a1"], fp)
    w2t, a2c = prep_gat(params["w2"], params["a2"], hp)

    wfct = _pad2(params["wfc"].T, hp, cp).astype(jnp.bfloat16)           # (Hp, Cp)
    # Padded class lanes get a huge negative bias so they vanish from the
    # lane-dense 128-wide log_softmax.
    bfc = jnp.full((1, cp), NEG_BIG, jnp.float32)
    bfc = bfc.at[0, :nclass].set(params["bfc"].astype(jnp.float32))

    weighted = not unweighted
    h1 = _gat_layer(x_p, adj_p, w1t, a1c, params["b1"].astype(jnp.float32),
                    tm, tn, weighted=weighted)
    out_p = _gat_layer(h1, adj_p, w2t, a2c, params["b2"].astype(jnp.float32),
                       tm, tn, weighted=weighted, fc_wt=wfct, fc_b=bfc)
    return out_p[:n, :nclass]


# ---------------------------------------------------------------------------
# Params + reference
# ---------------------------------------------------------------------------
def init_params(key, nfeat, nhid, nclass):
    """Deterministic f32 params with the PyTorch module's shapes."""
    ks = jax.random.split(key, 8)

    def unif(k, shape, fan_in):
        bound = 1.0 / jnp.sqrt(jnp.float32(fan_in))
        return jax.random.uniform(k, shape, jnp.float32, -bound, bound)

    return {
        # GATLayer 1: fc (nhid, nfeat) no bias; a = Linear(2*nhid, 1)
        "w1": unif(ks[0], (nhid, nfeat), nfeat),
        "a1": unif(ks[1], (1, 2 * nhid), 2 * nhid),
        "b1": unif(ks[2], (1,), 2 * nhid),
        # GATLayer 2
        "w2": unif(ks[3], (nhid, nhid), nhid),
        "a2": unif(ks[4], (1, 2 * nhid), 2 * nhid),
        "b2": unif(ks[5], (1,), 2 * nhid),
        # final fc: (nclass, nhid) + bias (nclass,)
        "wfc": unif(ks[6], (nclass, nhid), nhid),
        "bfc": unif(ks[7], (nclass,), nhid),
    }


def gnn_reference(x, adj, params, matmul_dtype=jnp.float32):
    """Pure-JAX dense reference mirroring the PyTorch sparse-GAT semantics.

    matmul_dtype=bfloat16 reproduces the kernel's MXU operand casting (with
    f32 accumulation); matmul_dtype=float32 is the exact f32 forward.
    """
    mask = (adj != 0.0).astype(jnp.float32)

    def mm(a, b):
        return jnp.dot(a.astype(matmul_dtype), b.astype(matmul_dtype),
                       preferred_element_type=jnp.float32)

    def gat(h_in, w, a, b):
        nh = w.shape[0]
        h0 = mm(h_in, w.T)
        score = (h0 @ a[:, :nh].T) + (h0 @ a[:, nh:].T).T + b
        score = jnp.where(score > 0, score, ALPHA_LRELU * score)
        e = jnp.exp(score) * mask
        denom = jnp.sum(e, axis=1, keepdims=True)
        denom = jnp.where(denom == 0.0, 1.0, denom)
        return mm(adj * (e / denom), h0)

    h = jax.nn.relu(gat(x, params["w1"], params["a1"], params["b1"]))
    h = jax.nn.relu(gat(h, params["w2"], params["a2"], params["b2"]))
    logits = mm(h, params["wfc"].T) + params["bfc"]
    return jax.nn.log_softmax(logits, axis=1)


if __name__ == "__main__":
    N, NFEAT, NHID, NCLASS = 200, 32, 32, 7

    key = jax.random.PRNGKey(0)
    kx, kp = jax.random.split(key)

    # node features
    x = jax.random.normal(kx, (N, NFEAT), jnp.float32)

    # deterministic unweighted adjacency: self-loops + bidirectional ring +
    # one deterministic long-range edge per node (values 1.0)
    idx = jnp.arange(N)
    adj = jnp.eye(N, dtype=jnp.float32)
    adj = adj.at[idx, (idx + 1) % N].set(1.0)
    adj = adj.at[idx, (idx - 1) % N].set(1.0)
    adj = adj.at[idx, (idx * 7 + 3) % N].set(1.0)

    params = init_params(kp, NFEAT, NHID, NCLASS)

    # Small tiles so the demo exercises the 2-D grid and the online-softmax
    # accumulation across several row/column blocks (production defaults:
    # block_rows=None -> 128/256 by chip generation, block_cols=512).
    out = jax.block_until_ready(
        gnn_forward(x, adj, params, block_rows=128, block_cols=128))
    assert out.shape == (N, NCLASS)
    assert bool(jnp.all(jnp.isfinite(out)))

    # Check vs a reference that mirrors the kernel's bf16 MXU casting.
    ref_bf16 = gnn_reference(x, adj, params, matmul_dtype=jnp.bfloat16)
    max_err = float(jnp.max(jnp.abs(out - ref_bf16)))
    assert jnp.allclose(out, ref_bf16, atol=6e-2, rtol=6e-2), (
        f"mismatch vs bf16-matched ref (max abs err {max_err:.3e})")

    # Loose check vs the exact f32 (PyTorch-precision) forward.
    ref_f32 = gnn_reference(x, adj, params, matmul_dtype=jnp.float32)
    assert jnp.allclose(out, ref_f32, atol=2.5e-1, rtol=2.5e-1), "mismatch vs f32 ref"

    print("KERNEL_OK")
</pallas_src>

<mosaic_0001>
module attributes {stable_mosaic.version = 11 : i64} {
  func.func @gat_project_kernel(%arg0: i32, %arg1: memref<128x128xbf16, #tpu.memory_space<vmem>>, %arg2: memref<128x128xbf16, #tpu.memory_space<vmem>>, %arg3: memref<128x128xf32, #tpu.memory_space<vmem>>, %arg4: memref<128x128xbf16, #tpu.memory_space<vmem>>, %arg5: memref<128x128xf32, #tpu.memory_space<vmem>>) attributes {dimension_semantics = [#tpu.dimension_semantics<parallel>], iteration_bounds = array<i64: 2>, scalar_prefetch = 0 : i64, scratch_operands = 0 : i64, tpu.core_type = #tpu.core_type<tc>, window_params = [{transform_indices = @transform_0, window_bounds = array<i64: 128, 128>}, {pipeline_mode = #tpu.pipeline_mode<synchronous>, transform_indices = @transform_1, window_bounds = array<i64: 128, 128>}, {pipeline_mode = #tpu.pipeline_mode<synchronous>, transform_indices = @transform_2, window_bounds = array<i64: 128, 128>}, {transform_indices = @transform_3, window_bounds = array<i64: 128, 128>}, {transform_indices = @transform_4, window_bounds = array<i64: 128, 128>}]} {
    %c0 = arith.constant 0 : index
    %c0_0 = arith.constant 0 : index
    %0 = vector.load %arg1[%c0, %c0_0] : memref<128x128xbf16, #tpu.memory_space<vmem>>, vector<128x128xbf16>
    %c0_1 = arith.constant 0 : index
    %c0_2 = arith.constant 0 : index
    %1 = vector.load %arg2[%c0_1, %c0_2] : memref<128x128xbf16, #tpu.memory_space<vmem>>, vector<128x128xbf16>
    %cst = arith.constant dense<0.000000e+00> : vector<128x128xf32>
    %2 = tpu.matmul %0, %1, %cst {dimension_numbers = #tpu.dot_dimension_numbers<[1], [0], [0], [1], [0, 0, 1, 1], [], []>} : vector<128x128xbf16>, vector<128x128xbf16>, vector<128x128xf32> -> vector<128x128xf32>
    %3 = arith.truncf %2 : vector<128x128xf32> to vector<128x128xbf16>
    %c0_3 = arith.constant 0 : index
    %c0_4 = arith.constant 0 : index
    %4 = vector.load %arg4[%c0_3, %c0_4] : memref<128x128xbf16, #tpu.memory_space<vmem>>, vector<128x128xbf16>
    tpu.vector_store %arg4[%c0_3, %c0_4], %3 {strides = array<i32>} : memref<128x128xbf16, #tpu.memory_space<vmem>>, vector<128x128xbf16>,
    %c0_5 = arith.constant 0 : index
    %c0_6 = arith.constant 0 : index
    %5 = vector.load %arg3[%c0_5, %c0_6] : memref<128x128xf32, #tpu.memory_space<vmem>>, vector<128x128xf32>
    %cst_7 = arith.constant dense<0.000000e+00> : vector<128x128xf32>
    %6 = tpu.matmul %2, %5, %cst_7 {dimension_numbers = #tpu.dot_dimension_numbers<[1], [0], [0], [1], [0, 0, 1, 1], [], []>} : vector<128x128xf32>, vector<128x128xf32>, vector<128x128xf32> -> vector<128x128xf32>
    %c0_8 = arith.constant 0 : index
    %c0_9 = arith.constant 0 : index
    %7 = vector.load %arg5[%c0_8, %c0_9] : memref<128x128xf32, #tpu.memory_space<vmem>>, vector<128x128xf32>
    tpu.vector_store %arg5[%c0_8, %c0_9], %6 {strides = array<i32>} : memref<128x128xf32, #tpu.memory_space<vmem>>, vector<128x128xf32>,
    return
  }
  func.func @transform_0(%arg0: i32) -> (i32, i32) {
    %c0_i32 = arith.constant 0 : i32
    %c0_i32_0 = arith.constant 0 : i32
    return %arg0, %c0_i32 : i32, i32
  }
  func.func @transform_1(%arg0: i32) -> (i32, i32) {
    %c0_i32 = arith.constant 0 : i32
    %c0_i32_0 = arith.constant 0 : i32
    %c0_i32_1 = arith.constant 0 : i32
    return %c0_i32, %c0_i32_0 : i32, i32
  }
  func.func @transform_2(%arg0: i32) -> (i32, i32) {
    %c0_i32 = arith.constant 0 : i32
    %c0_i32_0 = arith.constant 0 : i32
    %c0_i32_1 = arith.constant 0 : i32
    return %c0_i32, %c0_i32_0 : i32, i32
  }
  func.func @transform_3(%arg0: i32) -> (i32, i32) {
    %c0_i32 = arith.constant 0 : i32
    %c0_i32_0 = arith.constant 0 : i32
    return %arg0, %c0_i32 : i32, i32
  }
  func.func @transform_4(%arg0: i32) -> (i32, i32) {
    %c0_i32 = arith.constant 0 : i32
    %c0_i32_0 = arith.constant 0 : i32
    return %arg0, %c0_i32 : i32, i32
  }
}

</mosaic_0001>

<llo_original>
// kernel: tpu_custom_call.1
$region0: #{tpu_custom_call.1}
  #allocation0 [shape = 'u32[]', space=smem, size = 0x4, offset = 0x4, fixed_abs, tag = 'smem constant byte address 0x4 - core index']
  #allocation1 [shape = 'u32[144,128]{1,0:T(1,128)}', space=vmem, size = 0x12000, scoped, tag = 'internal scratch']
  %s0 = inlined_call_operand.hbm [shape: bf16[256,128], index: 0, kind: input, shape index: {}]
  %s1 = inlined_call_operand.hbm [shape: bf16[128,128], index: 1, kind: input, shape index: {}]
  %s2 = inlined_call_operand.hbm [shape: f32[128,128], index: 2, kind: input, shape index: {}]
  %s3 = inlined_call_operand.hbm [shape: bf16[256,128], index: 3, kind: output, shape index: {0}]
  %s4 = inlined_call_operand.hbm [shape: f32[256,128], index: 4, kind: output, shape index: {1}]
  %5 = xla_tuple %s3, %s4
  %s6 = sld [smem:[#allocation0]]
  $region65: #{tpu_custom_call.1} parent=0
    _
  %s8 = ssub.s32 1, %s6
  %s9 = scalar_select 0, %s8, %s6
  $region1: #{tpu_custom_call.1} parent=0
    #allocation2 [shape = 'u8[65536]{0}', space=vmem, size = 0x10000, scoped, tag = 'input window, operand 0']
    #allocation3 [shape = 's32[2]{0}', space=sflag, size = 0x8, scoped, tag = 'scoped memory for tpu_custom_call.1']
    #allocation4 [shape = 's32[2]{0}', space=sflag, size = 0x8, scoped, tag = 'scoped memory for tpu_custom_call.1']
    #allocation5 [shape = 'u8[32768]{0}', space=vmem, size = 0x8000, scoped, tag = 'input window, operand 1, single buffered']
    #allocation6 [shape = 's32[1]{0}', space=sflag, size = 0x4, scoped, tag = 'scoped memory for tpu_custom_call.1']
    #allocation7 [shape = 'u8[65536]{0}', space=vmem, size = 0x10000, scoped, tag = 'input window, operand 2, single buffered']
    #allocation8 [shape = 'u8[65536]{0}', space=vmem, size = 0x10000, scoped, tag = 'output window, operand 0']
    #allocation9 [shape = 'u8[131072]{0}', space=vmem, size = 0x20000, scoped, tag = 'output window, operand 1']
    #allocation10 [shape = 's32[2]{0}', space=sflag, size = 0x8, scoped, tag = 'scoped memory for tpu_custom_call.1']
    %10 = vsyncpa [#allocation3], 0
    %s11 = scalar_lea.sflag [#allocation3], 1
    %12 = vsyncpa %s11, 0
    %13 = vsyncpa [#allocation6], 0
    %14 = vsyncpa [#allocation4], 0
    %s15 = scalar_lea.sflag [#allocation4], 1
    %16 = vsyncpa %s15, 0
    %17 = vsyncpa [#allocation10], 0
    %s18 = scalar_lea.sflag [#allocation10], 1
    %19 = vsyncpa %s18, 0
    loop: start=0, step=1, limit=4
    $region2: #{tpu_custom_call.1} parent=1 // loop_pre_header
      _
    $region3: #{tpu_custom_call.1} parent=1 // loop_header
      %s21 = sphi 0, %s25
      %p22 = scmp.ge.s32.totalorder %s21, 4
      %s31 = sphi 0, %s33
      %s34 = sphi 0, %s31
      %s35 = sphi 0, %s34
      %s51 = sphi 0, %s35
      %s55 = sphi 0, %s55
      %s57 = sphi 0, %s55
      %s58 = sphi 0, %s57
      %s72 = sphi 0, %s58
      %s76 = sphi 0, %s76
      %s78 = sphi 0, %s76
      %s79 = sphi 0, %s78
      %s93 = sphi 0, %s79
      %s99 = sphi 0, %s101
      %s102 = sphi 0, %s99
      %s103 = sphi 0, %s102
      %s119 = sphi 0, %s103
      %s125 = sphi 0, %s127
      %s128 = sphi 0, %s125
      %s129 = sphi 0, %s128
      %s145 = sphi 0, %s129
    $region4: #{tpu_custom_call.1} parent=1 // loop_header_branch
      %24 = sbr.rel (%p22) target = $region8
    $region5: #{tpu_custom_call.1} parent=1 // loop_body
      %s26 = ssub.s32 %s21, 1
      %s27 = ssub.s32 %s21, 2
      %s28 = sadd.s32 %s21, 1
      %s29 = ssub.s32 %s21, %s28
      %p30 = scmp.eq.s32.totalorder %s29, 0
      %s32 = sadd.s32 %s31, 1
      %s33 = scalar_select %p30, %s31, %s32
      %p36 = pneg %p30
      %p37 = scmp.eq.s32.totalorder %s21, 1
      %p38 = por %p36, %p37
      %p39 = scmp.ne.s32.totalorder %s31, %s34
      %p40 = scmp.eq.s32.totalorder %s21, 0
      %p41 = por %p39, %p40
      %p42 = scmp.ne.s32.totalorder %s31, %s34
      %p43 = scmp.eq.s32.totalorder %s26, 1
      %p44 = por %p42, %p43
      %p45 = scmp.ne.s32.totalorder %s34, %s35
      %p46 = scmp.eq.s32.totalorder %s26, 0
      %p47 = por %p45, %p46
      %p48 = scmp.ne.s32.totalorder %s34, %s35
      %p49 = scmp.eq.s32.totalorder %s27, 1
      %p50 = por %p48, %p49
      %p52 = scmp.ne.s32.totalorder %s35, %s51
      %p53 = scmp.eq.s32.totalorder %s27, 0
      %p54 = por %p52, %p53
      %s56 = sadd.s32 %s55, 1
      %p59 = scmp.eq.s32.totalorder %s21, 1
      %p60 = scmp.ne.s32.totalorder %s55, %s57
      %p61 = scmp.eq.s32.totalorder %s21, 0
      %p62 = por %p60, %p61
      %p63 = scmp.ne.s32.totalorder %s55, %s57
      %p64 = scmp.eq.s32.totalorder %s26, 1
      %p65 = por %p63, %p64
      %p66 = scmp.ne.s32.totalorder %s57, %s58
      %p67 = scmp.eq.s32.totalorder %s26, 0
      %p68 = por %p66, %p67
      %p69 = scmp.ne.s32.totalorder %s57, %s58
      %p70 = scmp.eq.s32.totalorder %s27, 1
      %p71 = por %p69, %p70
      %p73 = scmp.ne.s32.totalorder %s58, %s72
      %p74 = scmp.eq.s32.totalorder %s27, 0
      %p75 = por %p73, %p74
      %s77 = sadd.s32 %s76, 1
      %p80 = scmp.eq.s32.totalorder %s21, 1
      %p81 = scmp.ne.s32.totalorder %s76, %s78
      %p82 = scmp.eq.s32.totalorder %s21, 0
      %p83 = por %p81, %p82
      %p84 = scmp.ne.s32.totalorder %s76, %s78
      %p85 = scmp.eq.s32.totalorder %s26, 1
      %p86 = por %p84, %p85
      %p87 = scmp.ne.s32.totalorder %s78, %s79
      %p88 = scmp.eq.s32.totalorder %s26, 0
      %p89 = por %p87, %p88
      %p90 = scmp.ne.s32.totalorder %s78, %s79
      %p91 = scmp.eq.s32.totalorder %s27, 1
      %p92 = por %p90, %p91
      %p94 = scmp.ne.s32.totalorder %s79, %s93
      %p95 = scmp.eq.s32.totalorder %s27, 0
      %p96 = por %p94, %p95
      %s97 = ssub.s32 %s21, %s28
      %p98 = scmp.eq.s32.totalorder %s97, 0
      %s100 = sadd.s32 %s99, 1
      %s101 = scalar_select %p98, %s99, %s100
      %p104 = pneg %p98
      %p105 = scmp.eq.s32.totalorder %s21, 1
      %p106 = por %p104, %p105
      %p107 = scmp.ne.s32.totalorder %s99, %s102
      %p108 = scmp.eq.s32.totalorder %s21, 0
      %p109 = por %p107, %p108
      %p110 = scmp.ne.s32.totalorder %s99, %s102
      %p111 = scmp.eq.s32.totalorder %s26, 1
      %p112 = por %p110, %p111
      %p113 = scmp.ne.s32.totalorder %s102, %s103
      %p114 = scmp.eq.s32.totalorder %s26, 0
      %p115 = por %p113, %p114
      %p116 = scmp.ne.s32.totalorder %s102, %s103
      %p117 = scmp.eq.s32.totalorder %s27, 1
      %p118 = por %p116, %p117
      %p120 = scmp.ne.s32.totalorder %s103, %s119
      %p121 = scmp.eq.s32.totalorder %s27, 0
      %p122 = por %p120, %p121
      %s123 = ssub.s32 %s21, %s28
      %p124 = scmp.eq.s32.totalorder %s123, 0
      %s126 = sadd.s32 %s125, 1
      %s127 = scalar_select %p124, %s125, %s126
      %p130 = pneg %p124
      %p131 = scmp.eq.s32.totalorder %s21, 1
      %p132 = por %p130, %p131
      %p133 = scmp.ne.s32.totalorder %s125, %s128
      %p134 = scmp.eq.s32.totalorder %s21, 0
      %p135 = por %p133, %p134
      %p136 = scmp.ne.s32.totalorder %s125, %s128
      %p137 = scmp.eq.s32.totalorder %s26, 1
      %p138 = por %p136, %p137
      %p139 = scmp.ne.s32.totalorder %s128, %s129
      %p140 = scmp.eq.s32.totalorder %s26, 0
      %p141 = por %p139, %p140
      %p142 = scmp.ne.s32.totalorder %s128, %s129
      %p143 = scmp.eq.s32.totalorder %s27, 1
      %p144 = por %p142, %p143
      %p146 = scmp.ne.s32.totalorder %s129, %s145
      %p147 = scmp.eq.s32.totalorder %s27, 0
      %p148 = por %p146, %p147
      %p149 = scmp.le.s32.totalorder 1, %s21
      %p150 = scmp.lt.s32.totalorder %s21, 3
      %p151 = pnand %p149, %p150
      %p152 = pneg %p151
      // Predicated region
      $region9: #{tpu_custom_call.1} parent=5 // pred_check
        _
      $region10: #{tpu_custom_call.1} parent=5 // pred_check_branch
        %154 = sbr.rel (%p151) target = $region12
      $region11: #{tpu_custom_call.1} parent=5 // pred_region
        %s155 = ssub.s32 %s21, 1
        // Predicated region
        $region13: #{tpu_custom_call.1} parent=11 // pred_check
          %p156 = pneg %p68
        $region14: #{tpu_custom_call.1} parent=11 // pred_check_branch
          %158 = sbr.rel (%p156) target = $region16
        $region15: #{tpu_custom_call.1} parent=11 // pred_region
          %s160 = ssub.s32 1024, 1024
          %161 = vsyncadd [#allocation6], %s160
          %s162 = sshll.u32 [#allocation5], 4
          %s163 = int_to_ptr.vmem [resolvable:$true] %s162
          %168 = dma.hbm_to_vmem [thread:$0]  %s1, 1024, %s163, [#allocation6], 64, 64, 4
        $region16: #{tpu_custom_call.1} parent=11 // pred_fallthru
          _
        // Predicated region
        $region17: #{tpu_custom_call.1} parent=11 // pred_check
          %p169 = pneg %p89
        $region18: #{tpu_custom_call.1} parent=11 // pred_check_branch
          %171 = sbr.rel (%p169) target = $region20
        $region19: #{tpu_custom_call.1} parent=11 // pred_region
          %s173 = ssub.s32 2048, 2048
          %174 = vsyncadd [#allocation6], %s173
          %s175 = sshll.u32 [#allocation7], 4
          %s176 = int_to_ptr.vmem [resolvable:$true] %s175
          %181 = dma.hbm_to_vmem [thread:$0]  %s2, 2048, %s176, [#allocation6], 128, 128, 8
        $region20: #{tpu_custom_call.1} parent=11 // pred_fallthru
          _
      $region12: #{tpu_custom_call.1} parent=5 // pred_fallthru
        _
      %p182 = scmp.lt.s32.totalorder %s21, 2
      // Predicated region
      $region21: #{tpu_custom_call.1} parent=5 // pred_check
        %p183 = pneg %p182
      $region22: #{tpu_custom_call.1} parent=5 // pred_check_branch
        %185 = sbr.rel (%p183) target = $region24
      $region23: #{tpu_custom_call.1} parent=5 // pred_region
        // Predicated region
        $region25: #{tpu_custom_call.1} parent=23 // pred_check
          %p186 = pneg %p41
        $region26: #{tpu_custom_call.1} parent=23 // pred_check_branch
          %188 = sbr.rel (%p186) target = $region28
        $region27: #{tpu_custom_call.1} parent=23 // pred_region
          %s189 = sand.u32 %s31, 1
          %s190 = scalar_lea.sflag [#allocation3], %s189
          %s191 = sand.u32 %s31, 1
          %s192 = smul.addr %s191, 64
          %s193 = scalar_lea.vmem [#allocation2], %s192
          %s194 = smul.u32 16, %s21
          %s196 = ssub.s32 1024, 1024
          %197 = vsyncadd %s190, %s196
          %s198 = smul.addr %s194, 64
          %s199 = scalar_lea.hbm %s0, %s198
          %s200 = sshll.u32 %s193, 4
          %s201 = int_to_ptr.vmem [resolvable:$true] %s200
          %206 = dma.hbm_to_vmem [thread:$0]  %s199, 1024, %s201, %s190, 64, 64, 4
        $region28: #{tpu_custom_call.1} parent=23 // pred_fallthru
          _
      $region24: #{tpu_custom_call.1} parent=5 // pred_fallthru
        _
      %p207 = scmp.le.s32.totalorder 1, %s21
      %p208 = scmp.lt.s32.totalorder %s21, 3
      %p209 = pnand %p207, %p208
      %p210 = pneg %p209
      // Predicated region
      $region29: #{tpu_custom_call.1} parent=5 // pred_check
        _
      $region30: #{tpu_custom_call.1} parent=5 // pred_check_branch
        %212 = sbr.rel (%p209) target = $region32
      $region31: #{tpu_custom_call.1} parent=5 // pred_region
        %s213 = ssub.s32 %s21, 1
        %s214 = sand.u32 %s34, 1
        %s215 = scalar_lea.sflag [#allocation3], %s214
        %s216 = sand.u32 %s34, 1
        %s217 = smul.addr %s216, 64
        %s218 = scalar_lea.vmem [#allocation2], %s217
        // Predicated region
        $region33: #{tpu_custom_call.1} parent=31 // pred_check
          %p219 = pneg %p47
        $region34: #{tpu_custom_call.1} parent=31 // pred_check_branch
          %221 = sbr.rel (%p219) target = $region36
        $region35: #{tpu_custom_call.1} parent=31 // pred_region
          %222 = dma.done %s215, 1024
        $region36: #{tpu_custom_call.1} parent=31 // pred_fallthru
          _
        // Predicated region
        $region37: #{tpu_custom_call.1} parent=31 // pred_check
          %p223 = pneg %p68
        $region38: #{tpu_custom_call.1} parent=31 // pred_check_branch
          %225 = sbr.rel (%p223) target = $region40
        $region39: #{tpu_custom_call.1} parent=31 // pred_region
          %226 = dma.done [#allocation6], 1024
        $region40: #{tpu_custom_call.1} parent=31 // pred_fallthru
          _
        // Predicated region
        $region41: #{tpu_custom_call.1} parent=31 // pred_check
          %p227 = pneg %p89
        $region42: #{tpu_custom_call.1} parent=31 // pred_check_branch
          %229 = sbr.rel (%p227) target = $region44
        $region43: #{tpu_custom_call.1} parent=31 // pred_region
          %230 = dma.done [#allocation6], 2048
        $region44: #{tpu_custom_call.1} parent=31 // pred_fallthru
          _
        %s231 = sand.u32 %s34, 1
        %s232 = scalar_lea.sflag [#allocation3], %s231
        %s233 = sand.u32 %s34, 1
        %s234 = smul.addr %s233, 64
        %s235 = scalar_lea.vmem [#allocation2], %s234
        %p236 = pneg %p47
        %p237 = pneg %p44
        %p238 = pneg %p68
        %p239 = pneg %p65
        %p240 = pneg %p89
        %p241 = pneg %p86
        %p242 = pneg %p115
        %p243 = pneg %p112
        %s244 = sand.u32 %s102, 1
        %s245 = scalar_lea.sflag [#allocation4], %s244
        %s246 = sand.u32 %s102, 1
        %s247 = smul.addr %s246, 64
        %s248 = scalar_lea.vmem [#allocation8], %s247
        %p249 = pneg %p141
        %p250 = pneg %p138
        %s251 = sand.u32 %s128, 1
        %s252 = scalar_lea.sflag [#allocation10], %s251
        %s253 = sand.u32 %s128, 1
        %s254 = smul.addr %s253, 128
        %s255 = scalar_lea.vmem [#allocation9], %s254
        %s256 = smul.u32 16, %s26
        %s257 = smul.u32 16, %s26
        %s258 = smul.u32 16, %s26
        %v260 = vld [vmem:[%s218] sm:$0xf]
        %v261 = vld [vmem:[%s218 + $0x4] sm:$0xf]
        %v262 = vld [vmem:[%s218 + $0x8] sm:$0xf]
        %v263 = vld [vmem:[%s218 + $0xc] sm:$0xf]
        %v264 = vld [vmem:[%s218 + $0x10] sm:$0xf]
        %v265 = vld [vmem:[%s218 + $0x14] sm:$0xf]
        %v266 = vld [vmem:[%s218 + $0x18] sm:$0xf]
        %v267 = vld [vmem:[%s218 + $0x1c] sm:$0xf]
        %v268 = vld [vmem:[%s218 + $0x20] sm:$0xf]
        %v269 = vld [vmem:[%s218 + $0x24] sm:$0xf]
        %v270 = vld [vmem:[%s218 + $0x28] sm:$0xf]
        %v271 = vld [vmem:[%s218 + $0x2c] sm:$0xf]
        %v272 = vld [vmem:[%s218 + $0x30] sm:$0xf]
        %v273 = vld [vmem:[%s218 + $0x34] sm:$0xf]
        %v274 = vld [vmem:[%s218 + $0x38] sm:$0xf]
        %v275 = vld [vmem:[%s218 + $0x3c] sm:$0xf]
        %v276 = vld [vmem:[#allocation5] sm:$0xf]
        %v277 = vld [vmem:[#allocation5 + $0x4] sm:$0xf]
        %v278 = vld [vmem:[#allocation5 + $0x8] sm:$0xf]
        %v279 = vld [vmem:[#allocation5 + $0xc] sm:$0xf]
        %v280 = vld [vmem:[#allocation5 + $0x10] sm:$0xf]
        %v281 = vld [vmem:[#allocation5 + $0x14] sm:$0xf]
        %v282 = vld [vmem:[#allocation5 + $0x18] sm:$0xf]
        %v283 = vld [vmem:[#allocation5 + $0x1c] sm:$0xf]
        %v284 = vld [vmem:[#allocation5 + $0x20] sm:$0xf]
        %v285 = vld [vmem:[#allocation5 + $0x24] sm:$0xf]
        %v286 = vld [vmem:[#allocation5 + $0x28] sm:$0xf]
        %v287 = vld [vmem:[#allocation5 + $0x2c] sm:$0xf]
        %v288 = vld [vmem:[#allocation5 + $0x30] sm:$0xf]
        %v289 = vld [vmem:[#allocation5 + $0x34] sm:$0xf]
        %v290 = vld [vmem:[#allocation5 + $0x38] sm:$0xf]
        %v291 = vld [vmem:[#allocation5 + $0x3c] sm:$0xf]
        %v308 = vunpack.c.l.b16 %v260
        %v309 = vunpack.c.l.b16 %v261
        %v310 = vunpack.c.l.b16 %v262
        %v311 = vunpack.c.l.b16 %v263
        %v312 = vunpack.c.l.b16 %v264
        %v313 = vunpack.c.l.b16 %v265
        %v314 = vunpack.c.l.b16 %v266
        %v315 = vunpack.c.l.b16 %v267
        %v316 = vunpack.c.l.b16 %v268
        %v317 = vunpack.c.l.b16 %v269
        %v318 = vunpack.c.l.b16 %v270
        %v319 = vunpack.c.l.b16 %v271
        %v320 = vunpack.c.l.b16 %v272
        %v321 = vunpack.c.l.b16 %v273
        %v322 = vunpack.c.l.b16 %v274
        %v323 = vunpack.c.l.b16 %v275
        %v324 = vpack.c.b16 %v309, %v308
        %v325 = vpack.c.b16 %v311, %v310
        %v326 = vpack.c.b16 %v313, %v312
        %v327 = vpack.c.b16 %v315, %v314
        %v328 = vpack.c.b16 %v317, %v316
        %v329 = vpack.c.b16 %v319, %v318
        %v330 = vpack.c.b16 %v321, %v320
        %v331 = vpack.c.b16 %v323, %v322
        %v356 = vunpack.c.l.b16 %v276
        %v357 = vunpack.c.l.b16 %v277
        %v358 = vunpack.c.l.b16 %v278
        %v359 = vunpack.c.l.b16 %v279
        %v360 = vunpack.c.l.b16 %v280
        %v361 = vunpack.c.l.b16 %v281
        %v362 = vunpack.c.l.b16 %v282
        %v363 = vunpack.c.l.b16 %v283
        %v364 = vunpack.c.l.b16 %v284
        %v365 = vunpack.c.l.b16 %v285
        %v366 = vunpack.c.l.b16 %v286
        %v367 = vunpack.c.l.b16 %v287
        %v368 = vunpack.c.l.b16 %v288
        %v369 = vunpack.c.l.b16 %v289
        %v370 = vunpack.c.l.b16 %v290
        %v371 = vunpack.c.l.b16 %v291
        %v372 = vpack.c.b16 %v357, %v356
        %v373 = vpack.c.b16 %v359, %v358
        %v374 = vpack.c.b16 %v361, %v360
        %v375 = vpack.c.b16 %v363, %v362
        %v376 = vpack.c.b16 %v365, %v364
        %v377 = vpack.c.b16 %v367, %v366
        %v378 = vpack.c.b16 %v369, %v368
        %v379 = vpack.c.b16 %v371, %v370
        %388 = vmatprep.subr.bf16.mxu0 0
        %389 = vmatpush1.bf16.msra.mxu0 %v372
        %390 = vmatprep.subr.bf16.mxu0 0
        %391 = vmatpush1.bf16.msra.mxu0 %v373
        %392 = vmatprep.subr.bf16.mxu0 0
        %393 = vmatpush1.bf16.msra.mxu0 %v374
        %394 = vmatprep.subr.bf16.mxu0 0
        %395 = vmatpush1.bf16.msra.mxu0 %v375
        %396 = vmatprep.subr.bf16.mxu0 0
        %397 = vmatpush1.bf16.msra.mxu0 %v376
        %398 = vmatprep.subr.bf16.mxu0 0
        %399 = vmatpush1.bf16.msra.mxu0 %v377
        %400 = vmatprep.subr.bf16.mxu0 0
        %401 = vmatpush1.bf16.msra.mxu0 %v378
        %402 = vmatprep.subr.bf16.mxu0 0
        %403 = vmatpush1.bf16.msra.mxu0 %v379
        %404 = vmatprep.subr.bf16.mxu0 0
        %405 = vmatpush1.bf16.msra.mxu0 0
        %406 = vmatprep.subr.bf16.mxu0 0
        %407 = vmatpush1.bf16.msra.mxu0 0
        %408 = vmatprep.subr.bf16.mxu0 0
        %409 = vmatpush1.bf16.msra.mxu0 0
        %410 = vmatprep.subr.bf16.mxu0 0
        %411 = vmatpush1.bf16.msra.mxu0 0
        %412 = vmatprep.subr.bf16.mxu0 0
        %413 = vmatpush1.bf16.msra.mxu0 0
        %414 = vmatprep.subr.bf16.mxu0 0
        %415 = vmatpush1.bf16.msra.mxu0 0
        %416 = vmatprep.subr.bf16.mxu0 0
        %417 = vmatpush1.bf16.msra.mxu0 0
        %418 = vmatprep.subr.bf16.mxu0 0
        %419 = vmatpush1.bf16.msra.mxu0 0
        %420 = vmatprep.mubr.bf16.mxu0 0
        %421 = vmatmul.mubr.bf16.gmra.mrb[0].mxu0 %v324
        %v422 = vpop.f32.mrb[0].mxu0
        %v423 = vadd.f32 0.0, %v422
        %v424 = vpop.f32.mrb[0].mxu0
        %v425 = vpop.f32.mrb[0].mxu0
        %v426 = vadd.f32 0.0, %v425
        %v427 = vpop.f32.mrb[0].mxu0
        %428 = vmatprep.mubr.bf16.mxu0 0
        %429 = vmatmul.mubr.bf16.gmra.mrb[0].mxu0 %v325
        %v430 = vpop.f32.mrb[0].mxu0
        %v431 = vadd.f32 0.0, %v430
        %v432 = vpop.f32.mrb[0].mxu0
        %v433 = vpop.f32.mrb[0].mxu0
        %v434 = vadd.f32 0.0, %v433
        %v435 = vpop.f32.mrb[0].mxu0
        %436 = vmatprep.mubr.bf16.mxu0 0
        %437 = vmatmul.mubr.bf16.gmra.mrb[0].mxu0 %v326
        %v438 = vpop.f32.mrb[0].mxu0
        %v439 = vadd.f32 0.0, %v438
        %v440 = vpop.f32.mrb[0].mxu0
        %v441 = vpop.f32.mrb[0].mxu0
        %v442 = vadd.f32 0.0, %v441
        %v443 = vpop.f32.mrb[0].mxu0
        %444 = vmatprep.mubr.bf16.mxu0 0
        %445 = vmatmul.mubr.bf16.gmra.mrb[0].mxu0 %v327
        %v446 = vpop.f32.mrb[0].mxu0
        %v447 = vadd.f32 0.0, %v446
        %v448 = vpop.f32.mrb[0].mxu0
        %v449 = vpop.f32.mrb[0].mxu0
        %v450 = vadd.f32 0.0, %v449
        %v451 = vpop.f32.mrb[0].mxu0
        %452 = vmatprep.mubr.bf16.mxu0 0
        %453 = vmatmul.mubr.bf16.gmra.mrb[0].mxu0 %v328
        %v454 = vpop.f32.mrb[0].mxu0
        %v455 = vadd.f32 0.0, %v454
        %v456 = vpop.f32.mrb[0].mxu0
        %v457 = vpop.f32.mrb[0].mxu0
        %v458 = vadd.f32 0.0, %v457
        %v459 = vpop.f32.mrb[0].mxu0
        %460 = vmatprep.mubr.bf16.mxu0 0
        %461 = vmatmul.mubr.bf16.gmra.mrb[0].mxu0 %v329
        %v462 = vpop.f32.mrb[0].mxu0
        %v463 = vadd.f32 0.0, %v462
        %v464 = vpop.f32.mrb[0].mxu0
        %v465 = vpop.f32.mrb[0].mxu0
        %v466 = vadd.f32 0.0, %v465
        %v467 = vpop.f32.mrb[0].mxu0
        %468 = vmatprep.mubr.bf16.mxu0 0
        %469 = vmatmul.mubr.bf16.gmra.mrb[0].mxu0 %v330
        %v470 = vpop.f32.mrb[0].mxu0
        %v471 = vadd.f32 0.0, %v470
        %v472 = vpop.f32.mrb[0].mxu0
        %v473 = vpop.f32.mrb[0].mxu0
        %v474 = vadd.f32 0.0, %v473
        %v475 = vpop.f32.mrb[0].mxu0
        %476 = vmatprep.mubr.bf16.mxu0 0
        %477 = vmatmul.mubr.bf16.gmra.mrb[0].mxu0 %v331
        %v478 = vpop.f32.mrb[0].mxu0
        %v479 = vadd.f32 0.0, %v478
        %v480 = vpop.f32.mrb[0].mxu0
        %v481 = vpop.f32.mrb[0].mxu0
        %v482 = vadd.f32 0.0, %v481
        %v483 = vpop.f32.mrb[0].mxu0
        %484 = vdwg.mxu0
        %v485 = vpack.c.bf16 %v426, %v423
        %v486 = vpack.c.bf16 %v434, %v431
        %v487 = vpack.c.bf16 %v442, %v439
        %v488 = vpack.c.bf16 %v450, %v447
        %v489 = vpack.c.bf16 %v458, %v455
        %v490 = vpack.c.bf16 %v466, %v463
        %v491 = vpack.c.bf16 %v474, %v471
        %v492 = vpack.c.bf16 %v482, %v479
        %v501 = vunpack.c.l.b16 %v485
        %v502 = vunpack.c.h.b16 %v485
        %v503 = vunpack.c.l.b16 %v486
        %v504 = vunpack.c.h.b16 %v486
        %v505 = vunpack.c.l.b16 %v487
        %v506 = vunpack.c.h.b16 %v487
        %v507 = vunpack.c.l.b16 %v488
        %v508 = vunpack.c.h.b16 %v488
        %v509 = vunpack.c.l.b16 %v489
        %v510 = vunpack.c.h.b16 %v489
        %v511 = vunpack.c.l.b16 %v490
        %v512 = vunpack.c.h.b16 %v490
        %v513 = vunpack.c.l.b16 %v491
        %v514 = vunpack.c.h.b16 %v491
        %v515 = vunpack.c.l.b16 %v492
        %v516 = vunpack.c.h.b16 %v492
        %v517 = vpack.c.b16 %v501, %v501
        %v518 = vpack.c.b16 %v502, %v502
        %v519 = vpack.c.b16 %v503, %v503
        %v520 = vpack.c.b16 %v504, %v504
        %v521 = vpack.c.b16 %v505, %v505
        %v522 = vpack.c.b16 %v506, %v506
        %v523 = vpack.c.b16 %v507, %v507
        %v524 = vpack.c.b16 %v508, %v508
        %v525 = vpack.c.b16 %v509, %v509
        %v526 = vpack.c.b16 %v510, %v510
        %v527 = vpack.c.b16 %v511, %v511
        %v528 = vpack.c.b16 %v512, %v512
        %v529 = vpack.c.b16 %v513, %v513
        %v530 = vpack.c.b16 %v514, %v514
        %v531 = vpack.c.b16 %v515, %v515
        %v532 = vpack.c.b16 %v516, %v516
        %549 = vst [vmem:[%s248] sm:$0xf] %v517
        %550 = vst [vmem:[%s248 + $0x4] sm:$0xf] %v518
        %551 = vst [vmem:[%s248 + $0x8] sm:$0xf] %v519
        %552 = vst [vmem:[%s248 + $0xc] sm:$0xf] %v520
        %553 = vst [vmem:[%s248 + $0x10] sm:$0xf] %v521
        %554 = vst [vmem:[%s248 + $0x14] sm:$0xf] %v522
        %555 = vst [vmem:[%s248 + $0x18] sm:$0xf] %v523
        %556 = vst [vmem:[%s248 + $0x1c] sm:$0xf] %v524
        %557 = vst [vmem:[%s248 + $0x20] sm:$0xf] %v525
        %558 = vst [vmem:[%s248 + $0x24] sm:$0xf] %v526
        %559 = vst [vmem:[%s248 + $0x28] sm:$0xf] %v527
        %560 = vst [vmem:[%s248 + $0x2c] sm:$0xf] %v528
        %561 = vst [vmem:[%s248 + $0x30] sm:$0xf] %v529
        %562 = vst [vmem:[%s248 + $0x34] sm:$0xf] %v530
        %563 = vst [vmem:[%s248 + $0x38] sm:$0xf] %v531
        %564 = vst [vmem:[%s248 + $0x3c] sm:$0xf] %v532
        %v565 = vld [vmem:[#allocation7] sm:$0xff]
        %v566 = vld [vmem:[#allocation7 + $0x8] sm:$0xff]
        %v567 = vld [vmem:[#allocation7 + $0x10] sm:$0xff]
        %v568 = vld [vmem:[#allocation7 + $0x18] sm:$0xff]
        %v569 = vld [vmem:[#allocation7 + $0x20] sm:$0xff]
        %v570 = vld [vmem:[#allocation7 + $0x28] sm:$0xff]
        %v571 = vld [vmem:[#allocation7 + $0x30] sm:$0xff]
        %v572 = vld [vmem:[#allocation7 + $0x38] sm:$0xff]
        %v573 = vld [vmem:[#allocation7 + $0x40] sm:$0xff]
        %v574 = vld [vmem:[#allocation7 + $0x48] sm:$0xff]
        %v575 = vld [vmem:[#allocation7 + $0x50] sm:$0xff]
        %v576 = vld [vmem:[#allocation7 + $0x58] sm:$0xff]
        %v577 = vld [vmem:[#allocation7 + $0x60] sm:$0xff]
        %v578 = vld [vmem:[#allocation7 + $0x68] sm:$0xff]
        %v579 = vld [vmem:[#allocation7 + $0x70] sm:$0xff]
        %v580 = vld [vmem:[#allocation7 + $0x78] sm:$0xff]
        %581 = vmatprep.subr.mxu0 0.0
        %582 = vmatpush1.msra.mxu0 %v565
        %583 = vmatprep.subr.mxu0 0.0
        %584 = vmatpush1.msra.mxu0 %v566
        %585 = vmatprep.subr.mxu0 0.0
        %586 = vmatpush1.msra.mxu0 %v567
        %587 = vmatprep.subr.mxu0 0.0
        %588 = vmatpush1.msra.mxu0 %v568
        %589 = vmatprep.subr.mxu0 0.0
        %590 = vmatpush1.msra.mxu0 %v569
        %591 = vmatprep.subr.mxu0 0.0
        %592 = vmatpush1.msra.mxu0 %v570
        %593 = vmatprep.subr.mxu0 0.0
        %594 = vmatpush1.msra.mxu0 %v571
        %595 = vmatprep.subr.mxu0 0.0
        %596 = vmatpush1.msra.mxu0 %v572
        %597 = vmatprep.subr.mxu0 0.0
        %598 = vmatpush1.msra.mxu0 %v573
        %599 = vmatprep.subr.mxu0 0.0
        %600 = vmatpush1.msra.mxu0 %v574
        %601 = vmatprep.subr.mxu0 0.0
        %602 = vmatpush1.msra.mxu0 %v575
        %603 = vmatprep.subr.mxu0 0.0
        %604 = vmatpush1.msra.mxu0 %v576
        %605 = vmatprep.subr.mxu0 0.0
        %606 = vmatpush1.msra.mxu0 %v577
        %607 = vmatprep.subr.mxu0 0.0
        %608 = vmatpush1.msra.mxu0 %v578
        %609 = vmatprep.subr.mxu0 0.0
        %610 = vmatpush1.msra.mxu0 %v579
        %611 = vmatprep.subr.mxu0 0.0
        %612 = vmatpush1.msra.mxu0 %v580
        %613 = vmatprep.subr.mxu0 0.0
        %614 = vmatpush1.msra.mxu0 0.0
        %615 = vmatprep.subr.mxu0 0.0
        %616 = vmatpush1.msra.mxu0 0.0
        %617 = vmatprep.subr.mxu0 0.0
        %618 = vmatpush1.msra.mxu0 0.0
        %619 = vmatprep.subr.mxu0 0.0
        %620 = vmatpush1.msra.mxu0 0.0
        %621 = vmatprep.subr.mxu0 0.0
        %622 = vmatpush1.msra.mxu0 0.0
        %623 = vmatprep.subr.mxu0 0.0
        %624 = vmatpush1.msra.mxu0 0.0
        %625 = vmatprep.subr.mxu0 0.0
        %626 = vmatpush1.msra.mxu0 0.0
        %627 = vmatprep.subr.mxu0 0.0
        %628 = vmatpush1.msra.mxu0 0.0
        %629 = vmatprep.subr.mxu0 0.0
        %630 = vmatpush1.msra.mxu0 0.0
        %631 = vmatprep.subr.mxu0 0.0
        %632 = vmatpush1.msra.mxu0 0.0
        %633 = vmatprep.subr.mxu0 0.0
        %634 = vmatpush1.msra.mxu0 0.0
        %635 = vmatprep.subr.mxu0 0.0
        %636 = vmatpush1.msra.mxu0 0.0
        %637 = vmatprep.subr.mxu0 0.0
        %638 = vmatpush1.msra.mxu0 0.0
        %639 = vmatprep.subr.mxu0 0.0
        %640 = vmatpush1.msra.mxu0 0.0
        %641 = vmatprep.subr.mxu0 0.0
        %642 = vmatpush1.msra.mxu0 0.0
        %643 = vmatprep.subr.mxu0 0.0
        %644 = vmatpush1.msra.mxu0 0.0
        %645 = vmatprep.mubr.f32.mxu0 0.0
        %646 = vmatmul.mubr.f32.gmra.mrb[0].mxu0 %v423
        %v647 = vpop.f32.mrb[0].mxu0
        %v648 = vadd.f32 0.0, %v647
        %v649 = vpop.f32.mrb[0].mxu0
        %650 = vmatprep.mubr.f32.mxu0 0.0
        %651 = vmatmul.mubr.f32.gmra.mrb[0].mxu0 %v426
        %v652 = vpop.f32.mrb[0].mxu0
        %v653 = vadd.f32 0.0, %v652
        %v654 = vpop.f32.mrb[0].mxu0
        %655 = vmatprep.mubr.f32.mxu0 0.0
        %656 = vmatmul.mubr.f32.gmra.mrb[0].mxu0 %v431
        %v657 = vpop.f32.mrb[0].mxu0
        %v658 = vadd.f32 0.0, %v657
        %v659 = vpop.f32.mrb[0].mxu0
        %660 = vmatprep.mubr.f32.mxu0 0.0
        %661 = vmatmul.mubr.f32.gmra.mrb[0].mxu0 %v434
        %v662 = vpop.f32.mrb[0].mxu0
        %v663 = vadd.f32 0.0, %v662
        %v664 = vpop.f32.mrb[0].mxu0
        %665 = vmatprep.mubr.f32.mxu0 0.0
        %666 = vmatmul.mubr.f32.gmra.mrb[0].mxu0 %v439
        %v667 = vpop.f32.mrb[0].mxu0
        %v668 = vadd.f32 0.0, %v667
        %v669 = vpop.f32.mrb[0].mxu0
        %670 = vmatprep.mubr.f32.mxu0 0.0
        %671 = vmatmul.mubr.f32.gmra.mrb[0].mxu0 %v442
        %v672 = vpop.f32.mrb[0].mxu0
        %v673 = vadd.f32 0.0, %v672
        %v674 = vpop.f32.mrb[0].mxu0
        %675 = vmatprep.mubr.f32.mxu0 0.0
        %676 = vmatmul.mubr.f32.gmra.mrb[0].mxu0 %v447
        %v677 = vpop.f32.mrb[0].mxu0
        %v678 = vadd.f32 0.0, %v677
        %v679 = vpop.f32.mrb[0].mxu0
        %680 = vmatprep.mubr.f32.mxu0 0.0
        %681 = vmatmul.mubr.f32.gmra.mrb[0].mxu0 %v450
        %v682 = vpop.f32.mrb[0].mxu0
        %v683 = vadd.f32 0.0, %v682
        %v684 = vpop.f32.mrb[0].mxu0
        %685 = vmatprep.mubr.f32.mxu0 0.0
        %686 = vmatmul.mubr.f32.gmra.mrb[0].mxu0 %v455
        %v687 = vpop.f32.mrb[0].mxu0
        %v688 = vadd.f32 0.0, %v687
        %v689 = vpop.f32.mrb[0].mxu0
        %690 = vmatprep.mubr.f32.mxu0 0.0
        %691 = vmatmul.mubr.f32.gmra.mrb[0].mxu0 %v458
        %v692 = vpop.f32.mrb[0].mxu0
        %v693 = vadd.f32 0.0, %v692
        %v694 = vpop.f32.mrb[0].mxu0
        %695 = vmatprep.mubr.f32.mxu0 0.0
        %696 = vmatmul.mubr.f32.gmra.mrb[0].mxu0 %v463
        %v697 = vpop.f32.mrb[0].mxu0
        %v698 = vadd.f32 0.0, %v697
        %v699 = vpop.f32.mrb[0].mxu0
        %700 = vmatprep.mubr.f32.mxu0 0.0
        %701 = vmatmul.mubr.f32.gmra.mrb[0].mxu0 %v466
        %v702 = vpop.f32.mrb[0].mxu0
        %v703 = vadd.f32 0.0, %v702
        %v704 = vpop.f32.mrb[0].mxu0
        %705 = vmatprep.mubr.f32.mxu0 0.0
        %706 = vmatmul.mubr.f32.gmra.mrb[0].mxu0 %v471
        %v707 = vpop.f32.mrb[0].mxu0
        %v708 = vadd.f32 0.0, %v707
        %v709 = vpop.f32.mrb[0].mxu0
        %710 = vmatprep.mubr.f32.mxu0 0.0
        %711 = vmatmul.mubr.f32.gmra.mrb[0].mxu0 %v474
        %v712 = vpop.f32.mrb[0].mxu0
        %v713 = vadd.f32 0.0, %v712
        %v714 = vpop.f32.mrb[0].mxu0
        %715 = vmatprep.mubr.f32.mxu0 0.0
        %716 = vmatmul.mubr.f32.gmra.mrb[0].mxu0 %v479
        %v717 = vpop.f32.mrb[0].mxu0
        %v718 = vadd.f32 0.0, %v717
        %v719 = vpop.f32.mrb[0].mxu0
        %720 = vmatprep.mubr.f32.mxu0 0.0
        %721 = vmatmul.mubr.f32.gmra.mrb[0].mxu0 %v482
        %v722 = vpop.f32.mrb[0].mxu0
        %v723 = vadd.f32 0.0, %v722
        %v724 = vpop.f32.mrb[0].mxu0
        %725 = vdwg.mxu0
        %726 = vst [vmem:[%s255] sm:$0xff] %v648
        %727 = vst [vmem:[%s255 + $0x8] sm:$0xff] %v653
        %728 = vst [vmem:[%s255 + $0x10] sm:$0xff] %v658
        %729 = vst [vmem:[%s255 + $0x18] sm:$0xff] %v663
        %730 = vst [vmem:[%s255 + $0x20] sm:$0xff] %v668
        %731 = vst [vmem:[%s255 + $0x28] sm:$0xff] %v673
        %732 = vst [vmem:[%s255 + $0x30] sm:$0xff] %v678
        %733 = vst [vmem:[%s255 + $0x38] sm:$0xff] %v683
        %734 = vst [vmem:[%s255 + $0x40] sm:$0xff] %v688
        %735 = vst [vmem:[%s255 + $0x48] sm:$0xff] %v693
        %736 = vst [vmem:[%s255 + $0x50] sm:$0xff] %v698
        %737 = vst [vmem:[%s255 + $0x58] sm:$0xff] %v703
        %738 = vst [vmem:[%s255 + $0x60] sm:$0xff] %v708
        %739 = vst [vmem:[%s255 + $0x68] sm:$0xff] %v713
        %740 = vst [vmem:[%s255 + $0x70] sm:$0xff] %v718
        %741 = vst [vmem:[%s255 + $0x78] sm:$0xff] %v723
        %s742 = sand.u32 %s102, 1
        %s743 = scalar_lea.sflag [#allocation4], %s742
        %s744 = sand.u32 %s102, 1
        %s745 = smul.addr %s744, 64
        %s746 = scalar_lea.vmem [#allocation8], %s745
        %s747 = sand.u32 %s128, 1
        %s748 = scalar_lea.sflag [#allocation10], %s747
        %s749 = sand.u32 %s128, 1
        %s750 = smul.addr %s749, 128
        %s751 = scalar_lea.vmem [#allocation9], %s750
        // Predicated region
        $region45: #{tpu_custom_call.1} parent=31 // pred_check
          %p752 = pneg %p112
        $region46: #{tpu_custom_call.1} parent=31 // pred_check_branch
          %754 = sbr.rel (%p752) target = $region48
        $region47: #{tpu_custom_call.1} parent=31 // pred_region
          %s755 = smul.u32 16, %s26
          %s757 = ssub.s32 1024, 1024
          %758 = vsyncadd %s743, %s757
          %s759 = smul.addr %s755, 64
          %s760 = scalar_lea.hbm %s3, %s759
          %s761 = sshll.u32 %s746, 4
          %s762 = int_to_ptr.vmem [resolvable:$true] %s761
          %767 = dma.vmem_to_hbm [thread:$0]  %s762, 1024, %s760, %s743, 64, 64, 4
        $region48: #{tpu_custom_call.1} parent=31 // pred_fallthru
          _
        // Predicated region
        $region49: #{tpu_custom_call.1} parent=31 // pred_check
          %p768 = pneg %p138
        $region50: #{tpu_custom_call.1} parent=31 // pred_check_branch
          %770 = sbr.rel (%p768) target = $region52
        $region51: #{tpu_custom_call.1} parent=31 // pred_region
          %s771 = smul.u32 16, %s26
          %s773 = ssub.s32 2048, 2048
          %774 = vsyncadd %s748, %s773
          %s775 = smul.addr %s771, 128
          %s776 = scalar_lea.hbm %s4, %s775
          %s777 = sshll.u32 %s751, 4
          %s778 = int_to_ptr.vmem [resolvable:$true] %s777
          %783 = dma.vmem_to_hbm [thread:$0]  %s778, 2048, %s776, %s748, 128, 128, 8
        $region52: #{tpu_custom_call.1} parent=31 // pred_fallthru
          _
      $region32: #{tpu_custom_call.1} parent=5 // pred_fallthru
        _
      %p784 = scmp.le.s32.totalorder 2, %s21
      // Predicated region
      $region53: #{tpu_custom_call.1} parent=5 // pred_check
        %p785 = pneg %p784
      $region54: #{tpu_custom_call.1} parent=5 // pred_check_branch
        %787 = sbr.rel (%p785) target = $region56
      $region55: #{tpu_custom_call.1} parent=5 // pred_region
        %s788 = ssub.s32 %s21, 2
        // Predicated region
        $region57: #{tpu_custom_call.1} parent=55 // pred_check
          %p789 = pneg %p118
        $region58: #{tpu_custom_call.1} parent=55 // pred_check_branch
          %791 = sbr.rel (%p789) target = $region60
        $region59: #{tpu_custom_call.1} parent=55 // pred_region
          %s792 = sand.u32 %s103, 1
          %s793 = scalar_lea.sflag [#allocation4], %s792
          %s794 = sand.u32 %s103, 1
          %s795 = smul.addr %s794, 64
          %s796 = scalar_lea.vmem [#allocation8], %s795
          %797 = dma.done %s793, 1024
        $region60: #{tpu_custom_call.1} parent=55 // pred_fallthru
          _
        // Predicated region
        $region61: #{tpu_custom_call.1} parent=55 // pred_check
          %p798 = pneg %p144
        $region62: #{tpu_custom_call.1} parent=55 // pred_check_branch
          %800 = sbr.rel (%p798) target = $region64
        $region63: #{tpu_custom_call.1} parent=55 // pred_region
          %s801 = sand.u32 %s129, 1
          %s802 = scalar_lea.sflag [#allocation10], %s801
          %s803 = sand.u32 %s129, 1
          %s804 = smul.addr %s803, 128
          %s805 = scalar_lea.vmem [#allocation9], %s804
          %806 = dma.done %s802, 2048
        $region64: #{tpu_custom_call.1} parent=55 // pred_fallthru
          _
      $region56: #{tpu_custom_call.1} parent=5 // pred_fallthru
        _
    $region6: #{tpu_custom_call.1} parent=1 // loop_footer
      %s25 = sadd.s32 1, %s21
    $region7: #{tpu_custom_call.1} parent=1 // loop_footer_branch
      %20 = sbr.rel target = $region3
    $region8: #{tpu_custom_call.1} parent=1 // loop_exit
      _
    %807 = vsyncpa [#allocation3], 1
    %s808 = scalar_lea.sflag [#allocation3], 1
    %809 = vsyncpa %s808, 1
    %810 = vsyncpa [#allocation6], 1
    %811 = vsyncpa [#allocation4], 1
    %s812 = scalar_lea.sflag [#allocation4], 1
    %813 = vsyncpa %s812, 1
    %814 = vsyncpa [#allocation10], 1
    %s815 = scalar_lea.sflag [#allocation10], 1
    %816 = vsyncpa %s815, 1

</llo_original>
